<compile_context>
chip_gen: v5e
topology: v5e:2x2
jax: 0.10.0
libtpu: 0.0.40
codegen_flags: <defaults>
</compile_context>

<pallas_src>
import functools
import math

import jax
import jax.numpy as jnp
from jax.experimental import pallas as pl
from jax.experimental.pallas import tpu as pltpu

EPS = 1e-5


def _vmem_budget_bytes():
    """Generation-aware scoped-VMEM budget (~3/4 of physical VMEM)."""
    try:
        cap = int(pltpu.get_tpu_info().vmem_capacity_bytes)
    except Exception:
        cap = 64 * 1024 * 1024            # conservative (v7x-sized) fallback
    return max(16 * 1024 * 1024, (cap * 3) // 4)


_VMEM_BUDGET = _vmem_budget_bytes()


# ---------------------------------------------------------------------------
# 1x1 conv + BN (+ReLU), lane-dense via block-diagonal pixel packing
# ---------------------------------------------------------------------------
def _lane_pack_factor(cout, p):
    """Smallest k with (k*cout) % 128 == 0, provided k divides the pixel count."""
    if cout % 128 == 0:
        return 1
    k = 128 // math.gcd(cout, 128)
    if p % k != 0:
        return 1
    return k


def _conv1x1_kernel(x_ref, w_ref, shift_ref, o_ref, *, relu):
    # x_ref: (tile, k*Cin) f32   w_ref: (k*Cin, k*Cout) bf16 block-diagonal
    # (BN scale folded)          shift_ref: (1, k*Cout) f32
    y = jnp.dot(x_ref[...].astype(jnp.bfloat16), w_ref[...],
                preferred_element_type=jnp.float32) + shift_ref[...]
    if relu:
        y = jnp.maximum(y, 0.0)
    o_ref[...] = y


def conv1x1_bn(x, w, scale, shift, relu=False):
    """1x1 conv (channel matmul) with BN folded (scale->w, shift added), NHWC."""
    N, H, W, Cin = x.shape
    Cout = w.shape[1]
    P = N * H * W
    w_f = w * scale.reshape(1, Cout)
    # Lane packing: fold k image pixels into each matmul row with a
    # block-diagonal weight so stores are lane-dense (last dim % 128 == 0).
    k = _lane_pack_factor(Cout, P)
    Pq, Ci, Co = P // k, k * Cin, k * Cout
    if k > 1:
        w_f = jnp.kron(jnp.eye(k, dtype=w_f.dtype), w_f)   # (Ci, Co)
        shift_q = jnp.tile(shift, k)
    else:
        shift_q = shift
    # Byte-budget row tile (double-buffered f32 input + output blocks).
    bytes_per_row = 2 * 4 * (Ci + Co)
    tile = (_VMEM_BUDGET // 2) // max(1, bytes_per_row)
    tile = max(8, (tile // 8) * 8)
    tile = min(tile, Pq) if Pq >= 8 else Pq
    out = pl.pallas_call(
        functools.partial(_conv1x1_kernel, relu=relu),
        out_shape=jax.ShapeDtypeStruct((Pq, Co), jnp.float32),
        grid=(pl.cdiv(Pq, tile),),
        in_specs=[
            pl.BlockSpec((tile, Ci), lambda i: (i, 0)),
            pl.BlockSpec((Ci, Co), lambda i: (0, 0)),
            pl.BlockSpec((1, Co), lambda i: (0, 0)),
        ],
        out_specs=pl.BlockSpec((tile, Co), lambda i: (i, 0)),
        compiler_params=pltpu.CompilerParams(
            dimension_semantics=("parallel",),
            vmem_limit_bytes=_VMEM_BUDGET),
    )(x.reshape(Pq, Ci), w_f.astype(jnp.bfloat16),
      shift_q.reshape(1, Co).astype(jnp.float32))
    return out.reshape(N, H, W, Cout)


# ---------------------------------------------------------------------------
# 3x3 conv + (fused reflection pad) + BN (+ReLU), row-tiled
# ---------------------------------------------------------------------------
def _conv3x3_kernel(x_ref, w_ref, shift_ref, o_ref, *, th, relu, pad):
    # x_ref:     (1, H, W, Cin) full image, resident across the row-tile axis
    # w_ref:     (3, 3, Cin, Cout) bf16, BN scale folded in
    # shift_ref: (1, Cout) f32
    # o_ref:     (1, th, Wo, Cout) one tile of output rows
    _, H, W, Cin = x_ref.shape
    _, _, Wo, Cout = o_ref.shape
    r0 = pl.program_id(1) * th                     # first output row of tile
    if th % 8 == 0:
        r0 = pl.multiple_of(r0, th)
    if pad:
        # Rows [r0, r0+th+2) of the virtual reflection-padded image, built
        # from dynamic-start reads of the unpadded image (halo rows reflect
        # only at the very top / bottom of the image).
        top = x_ref[0, pl.ds(jnp.where(r0 > 0, r0 - 1, 1), 1), :, :]
        mid = x_ref[0, pl.ds(r0, th), :, :]
        bot = x_ref[0, pl.ds(jnp.where(r0 + th < H, r0 + th, H - 2), 1), :, :]
        rows = jnp.concatenate([top, mid, bot], axis=0)        # (th+2, W, Cin)
        xt = jnp.concatenate(
            [rows[:, 1:2, :], rows, rows[:, W - 2:W - 1, :]], axis=1)
    else:                                                      # plain VALID conv
        xt = x_ref[0, pl.ds(r0, th + 2), :, :]                 # (th+2, W, Cin)
    xt = xt.astype(jnp.bfloat16)
    acc = jnp.zeros((th * Wo, Cout), jnp.float32)
    for ky in range(3):
        for kx in range(3):
            tap = xt[ky:ky + th, kx:kx + Wo, :].reshape(th * Wo, Cin)
            acc = acc + jnp.dot(tap, w_ref[ky, kx],
                                preferred_element_type=jnp.float32)
    y = acc + shift_ref[...]
    if relu:
        y = jnp.maximum(y, 0.0)
    o_ref[...] = y.reshape(1, th, Wo, Cout)


def _pick_row_tile(ho, wo, cin, cout):
    # Rough per-output-row VMEM bytes in one grid step: padded input rows
    # (f32 value + bf16 cast), f32 accumulator, double-buffered f32 output.
    bytes_per_row = 6 * (wo + 2) * cin + 12 * wo * cout
    cap = max(1, (_VMEM_BUDGET // 4) // max(1, bytes_per_row))
    cap = min(cap, 64)
    if ho >= 16:
        cap = min(cap, ho // 2)     # keep >=2 row tiles: pipelining / megacore
    th = 1
    for d in range(1, ho + 1):
        if ho % d == 0 and d <= cap:
            th = d
    return th


def conv3x3_bn(x, w_hwio, scale, shift, relu=False, pad=True):
    """3x3 conv with BN folded (+ReLU).  pad=True fuses a 1px reflection pad."""
    N, H, W, Cin = x.shape
    Cout = w_hwio.shape[-1]
    Ho, Wo = (H, W) if pad else (H - 2, W - 2)
    w_f = (w_hwio * scale.reshape(1, 1, 1, Cout)).astype(jnp.bfloat16)
    th = _pick_row_tile(Ho, Wo, Cin, Cout)
    return pl.pallas_call(
        functools.partial(_conv3x3_kernel, th=th, relu=relu, pad=pad),
        out_shape=jax.ShapeDtypeStruct((N, Ho, Wo, Cout), jnp.float32),
        grid=(N, Ho // th),
        in_specs=[
            pl.BlockSpec((1, H, W, Cin), lambda n, h: (n, 0, 0, 0)),
            pl.BlockSpec((3, 3, Cin, Cout), lambda n, h: (0, 0, 0, 0)),
            pl.BlockSpec((1, Cout), lambda n, h: (0, 0)),
        ],
        out_specs=pl.BlockSpec((1, th, Wo, Cout), lambda n, h: (n, h, 0, 0)),
        compiler_params=pltpu.CompilerParams(
            dimension_semantics=("parallel", "parallel"),
            vmem_limit_bytes=_VMEM_BUDGET),
    )(x, w_f, shift.reshape(1, Cout).astype(jnp.float32))


# ---------------------------------------------------------------------------
# MaxPool 2x2 (ceil_mode) and standalone ReLU
# ---------------------------------------------------------------------------
def _maxpool_kernel(x_ref, o_ref):
    # x_ref: (t, 2, Wo, 2*C) -- pairs of image rows; horizontally adjacent
    #                           pixels packed along the lane axis.
    # o_ref: (t, Wo, C)
    C = o_ref.shape[-1]
    x = x_ref[...]
    v = jnp.maximum(x[:, 0], x[:, 1])                   # vertical max
    o_ref[...] = jnp.maximum(v[..., :C], v[..., C:])    # horizontal max


def maxpool2x2(x):
    """MaxPool2d((2,2),(2,2),(0,0), ceil_mode=True), NHWC."""
    N, H, W, C = x.shape
    Ho, Wo = -(-H // 2), -(-W // 2)
    if (H % 2) or (W % 2):
        # TODO(synk): fold the ceil_mode -inf padding into the kernel (mask)
        # instead of an extra HBM pad pass (only hit for odd H/W).
        x = jnp.pad(x, ((0, 0), (0, 2 * Ho - H), (0, 2 * Wo - W), (0, 0)),
                    constant_values=-jnp.inf)
    R = N * Ho
    xr = x.reshape(R, 2, Wo, 2 * C)                     # free row-major reshape
    bytes_per_row = 2 * 4 * (4 * Wo * C + Wo * C)       # dbl-buffered in + out
    t = (_VMEM_BUDGET // 2) // max(1, bytes_per_row)
    t = max(8, (t // 8) * 8)
    t = min(t, R) if R >= 8 else R
    out = pl.pallas_call(
        _maxpool_kernel,
        out_shape=jax.ShapeDtypeStruct((R, Wo, C), jnp.float32),
        grid=(pl.cdiv(R, t),),
        in_specs=[pl.BlockSpec((t, 2, Wo, 2 * C), lambda i: (i, 0, 0, 0))],
        out_specs=pl.BlockSpec((t, Wo, C), lambda i: (i, 0, 0)),
        compiler_params=pltpu.CompilerParams(
            dimension_semantics=("parallel",),
            vmem_limit_bytes=_VMEM_BUDGET),
    )(xr)
    return out.reshape(N, Ho, Wo, C)


def _relu_kernel(x_ref, o_ref):
    o_ref[...] = jnp.maximum(x_ref[...], 0.0)


def relu_op(x):
    """Standalone ReLU (only used when not fused into a preceding conv)."""
    shape = x.shape
    total = x.size
    if total % 128 == 0:                                # lane-dense flatten
        flat = x.reshape(total // 128, 128)
    else:
        flat = x.reshape(-1, shape[-1])
    R, C = flat.shape
    tile = R if R <= 1024 else 1024
    out = pl.pallas_call(
        _relu_kernel,
        out_shape=jax.ShapeDtypeStruct((R, C), jnp.float32),
        grid=(pl.cdiv(R, tile),),
        in_specs=[pl.BlockSpec((tile, C), lambda i: (i, 0))],
        out_specs=pl.BlockSpec((tile, C), lambda i: (i, 0)),
        compiler_params=pltpu.CompilerParams(
            dimension_semantics=("parallel",),
            vmem_limit_bytes=_VMEM_BUDGET),
    )(flat)
    return out.reshape(shape)


# ---------------------------------------------------------------------------
# Glue ops (pure indexing, no FLOPs)
# ---------------------------------------------------------------------------
def reflect_pad(x):
    # nn.ReflectionPad2d((1,1,1,1)) -- only used when not fused into conv3x3.
    return jnp.pad(x, ((0, 0), (1, 1), (1, 1), (0, 0)), mode="reflect")


def upsample2x(x):
    # nn.Upsample(scale_factor=2, mode='nearest')
    # TODO(synk): fuse into the consumer conv3x3 read path (avoid the 4x HBM
    # materialization of the upsampled activation).
    return jnp.repeat(jnp.repeat(x, 2, axis=1), 2, axis=2)


# ---------------------------------------------------------------------------
# EnDecoder.make_layers mirror + parameter init + forward
# ---------------------------------------------------------------------------
def build_layers(cfg):
    layers = []
    in_channels = 3 if 'M' in cfg else 52
    for v in cfg:
        if v == 'M':
            layers.append(('maxpool',))
        elif v == 'U':
            layers.append(('upsample',))
        elif v == 'RP':
            layers.append(('reflpad',))
        elif v == 'Re':
            layers.append(('relu',))
        else:
            layers.append(('conv3', in_channels, v))
            layers.append(('bn', v))
            in_channels = v
    if 'M' in cfg:
        for i, l in enumerate(layers):
            if l[0] == 'conv3':
                layers[i] = ('conv1', 3, l[2])   # first 3x3 -> 1x1 conv
                break
    return layers[:-1]                            # drop last layer


def init_params(layers, key):
    params = []
    for l in layers:
        kind = l[0]
        if kind in ('conv3', 'conv1'):
            _, cin, cout = l
            kh = 3 if kind == 'conv3' else 1
            key, sub = jax.random.split(key)
            w = 0.1 * jax.random.normal(sub, (cout, cin, kh, kh), jnp.float32)
            w = jnp.transpose(w, (2, 3, 1, 0))        # OIHW -> HWIO
            if kind == 'conv1':
                w = w.reshape(cin, cout)
            params.append({'w': w})
        elif kind == 'bn':
            c = l[1]
            key, k1, k2, k3, k4 = jax.random.split(key, 5)
            params.append({
                'gamma': 1.0 + 0.1 * jax.random.normal(k1, (c,), jnp.float32),
                'beta': 0.1 * jax.random.normal(k2, (c,), jnp.float32),
                'mean': 0.1 * jax.random.normal(k3, (c,), jnp.float32),
                'var': jnp.abs(1.0 + 0.1 * jax.random.normal(k4, (c,),
                                                             jnp.float32)),
            })
        else:
            params.append({})
    return params


# Pure-JAX references (correctness check only)
def ref_conv1x1_bn(x, w, scale, shift):
    return jnp.einsum('nhwc,cd->nhwd', x, w) * scale + shift


def ref_conv3x3_bn(x, w, scale, shift):
    y = jax.lax.conv_general_dilated(
        x, w, (1, 1), 'VALID', dimension_numbers=('NHWC', 'HWIO', 'NHWC'))
    return y * scale + shift


def ref_maxpool2x2(x):
    N, H, W, C = x.shape
    Ho, Wo = -(-H // 2), -(-W // 2)
    x = jnp.pad(x, ((0, 0), (0, 2 * Ho - H), (0, 2 * Wo - W), (0, 0)),
                constant_values=-jnp.inf)
    return jax.lax.reduce_window(x, -jnp.inf, jax.lax.max,
                                 (1, 2, 2, 1), (1, 2, 2, 1), 'VALID')


def endecoder_forward(x_nchw, layers, params, use_pallas=True):
    x = jnp.transpose(x_nchw, (0, 2, 3, 1)).astype(jnp.float32)  # NCHW->NHWC
    i, n = 0, len(layers)
    pend_pad = False
    while i < n:
        kind = layers[i][0]
        if kind in ('conv3', 'conv1'):
            w = params[i]['w']
            cout = layers[i][2]
            j = i + 1
            if j < n and layers[j][0] == 'bn':
                p = params[j]
                scale = p['gamma'] / jnp.sqrt(p['var'] + EPS)
                shift = p['beta'] - p['mean'] * scale
                j += 1
            else:
                scale = jnp.ones((cout,), jnp.float32)
                shift = jnp.zeros((cout,), jnp.float32)
            fuse_relu = use_pallas and j < n and layers[j][0] == 'relu'
            if fuse_relu:
                j += 1                                   # ReLU fused into conv
            if use_pallas:
                if kind == 'conv1':
                    x = conv1x1_bn(x, w, scale, shift, relu=fuse_relu)
                else:
                    x = conv3x3_bn(x, w, scale, shift, relu=fuse_relu,
                                   pad=pend_pad)
            else:
                if kind == 'conv1':
                    x = ref_conv1x1_bn(x, w, scale, shift)
                else:
                    x = ref_conv3x3_bn(x, w, scale, shift)
            pend_pad = False
            i = j
        elif kind == 'relu':
            x = relu_op(x) if use_pallas else jnp.maximum(x, 0.0)
            i += 1
        elif kind == 'maxpool':
            x = maxpool2x2(x) if use_pallas else ref_maxpool2x2(x)
            i += 1
        elif kind == 'reflpad':
            if use_pallas and i + 1 < n and layers[i + 1][0] == 'conv3':
                pend_pad = True          # fused into the next conv3x3 kernel
            else:
                x = reflect_pad(x)
            i += 1
        elif kind == 'upsample':
            x = upsample2x(x)
            i += 1
        else:
            i += 1
    return jnp.transpose(x, (0, 3, 1, 2))   # NHWC -> NCHW


if __name__ == "__main__":
    # cfg exercises: 1x1-conv replacement ('M' present), BN, fused ReLU,
    # fused reflection pad + row-tiled 3x3 conv (2 row tiles at H=16),
    # MaxPool (ceil_mode), nearest Upsample, trailing-layer drop.
    cfg = [8, 'Re', 'M', 'RP', 16, 'Re', 'U', 'RP', 16, 'Re']
    layers = build_layers(cfg)

    key = jax.random.PRNGKey(0)
    key, pkey, xkey = jax.random.split(key, 3)
    params = init_params(layers, pkey)
    x = jax.random.normal(xkey, (2, 3, 16, 16), jnp.float32)   # NCHW

    out = jax.block_until_ready(
        endecoder_forward(x, layers, params, use_pallas=True))
    ref = jax.block_until_ready(
        endecoder_forward(x, layers, params, use_pallas=False))

    assert out.shape == ref.shape == (2, 16, 16, 16)
    assert bool(jnp.allclose(out, ref, atol=5e-2, rtol=5e-2))
    print("KERNEL_OK")
</pallas_src>

<mosaic_0001>
module attributes {stable_mosaic.version = 11 : i64} {
  func.func @_conv1x1_kernel(%arg0: i32, %arg1: memref<32x48xf32, #tpu.memory_space<vmem>>, %arg2: memref<48x128xbf16, #tpu.memory_space<vmem>>, %arg3: memref<1x128xf32, #tpu.memory_space<vmem>>, %arg4: memref<32x128xf32, #tpu.memory_space<vmem>>) attributes {dimension_semantics = [#tpu.dimension_semantics<parallel>], iteration_bounds = array<i64: 1>, scalar_prefetch = 0 : i64, scratch_operands = 0 : i64, tpu.core_type = #tpu.core_type<tc>, window_params = [{transform_indices = @transform_0, window_bounds = array<i64: 32, 48>}, {pipeline_mode = #tpu.pipeline_mode<synchronous>, transform_indices = @transform_1, window_bounds = array<i64: 48, 128>}, {pipeline_mode = #tpu.pipeline_mode<synchronous>, transform_indices = @transform_2, window_bounds = array<i64: 1, 128>}, {transform_indices = @transform_3, window_bounds = array<i64: 32, 128>}]} {
    %c0 = arith.constant 0 : index
    %c0_0 = arith.constant 0 : index
    %0 = vector.load %arg1[%c0, %c0_0] : memref<32x48xf32, #tpu.memory_space<vmem>>, vector<32x48xf32>
    %1 = arith.truncf %0 : vector<32x48xf32> to vector<32x48xbf16>
    %c0_1 = arith.constant 0 : index
    %c0_2 = arith.constant 0 : index
    %2 = vector.load %arg2[%c0_1, %c0_2] : memref<48x128xbf16, #tpu.memory_space<vmem>>, vector<48x128xbf16>
    %cst = arith.constant dense<0.000000e+00> : vector<32x128xf32>
    %3 = tpu.matmul %1, %2, %cst {dimension_numbers = #tpu.dot_dimension_numbers<[1], [0], [0], [1], [0, 0, 1, 1], [], []>} : vector<32x48xbf16>, vector<48x128xbf16>, vector<32x128xf32> -> vector<32x128xf32>
    %c0_3 = arith.constant 0 : index
    %c0_4 = arith.constant 0 : index
    %4 = vector.load %arg3[%c0_3, %c0_4] : memref<1x128xf32, #tpu.memory_space<vmem>>, vector<1x128xf32>
    %5 = vector.broadcast %4 : vector<1x128xf32> to vector<32x128xf32>
    %6 = arith.addf %3, %5 : vector<32x128xf32>
    %cst_5 = arith.constant 0.000000e+00 : f32
    %7 = vector.broadcast %cst_5 : f32 to vector<32x128xf32>
    %8 = arith.maximumf %6, %7 : vector<32x128xf32>
    %c0_6 = arith.constant 0 : index
    %c0_7 = arith.constant 0 : index
    %9 = vector.load %arg4[%c0_6, %c0_7] : memref<32x128xf32, #tpu.memory_space<vmem>>, vector<32x128xf32>
    tpu.vector_store %arg4[%c0_6, %c0_7], %8 {strides = array<i32>} : memref<32x128xf32, #tpu.memory_space<vmem>>, vector<32x128xf32>,
    return
  }
  func.func @transform_0(%arg0: i32) -> (i32, i32) {
    %c0_i32 = arith.constant 0 : i32
    %c0_i32_0 = arith.constant 0 : i32
    return %arg0, %c0_i32 : i32, i32
  }
  func.func @transform_1(%arg0: i32) -> (i32, i32) {
    %c0_i32 = arith.constant 0 : i32
    %c0_i32_0 = arith.constant 0 : i32
    %c0_i32_1 = arith.constant 0 : i32
    return %c0_i32, %c0_i32_0 : i32, i32
  }
  func.func @transform_2(%arg0: i32) -> (i32, i32) {
    %c0_i32 = arith.constant 0 : i32
    %c0_i32_0 = arith.constant 0 : i32
    %c0_i32_1 = arith.constant 0 : i32
    return %c0_i32, %c0_i32_0 : i32, i32
  }
  func.func @transform_3(%arg0: i32) -> (i32, i32) {
    %c0_i32 = arith.constant 0 : i32
    %c0_i32_0 = arith.constant 0 : i32
    return %arg0, %c0_i32 : i32, i32
  }
}

</mosaic_0001>

<llo_original>
// kernel: tpu_custom_call.1
$region0: #{tpu_custom_call.1}
  #allocation0 [shape = 'u32[]', space=smem, size = 0x4, offset = 0x4, fixed_abs, tag = 'smem constant byte address 0x4 - core index']
  #allocation1 [shape = 'u32[72,128]{1,0:T(1,128)}', space=vmem, size = 0x9000, scoped, tag = 'internal scratch']
  %s0 = inlined_call_operand.hbm [shape: f32[32,48], index: 0, kind: input, shape index: {}]
  %s1 = inlined_call_operand.hbm [shape: bf16[48,128], index: 1, kind: input, shape index: {}]
  %s2 = inlined_call_operand.vmem [shape: f32[1,128], index: 2, kind: input, shape index: {}]
  %s3 = inlined_call_operand.hbm [shape: f32[32,128], index: 3, kind: output, shape index: {}]
  %s4 = sld [smem:[#allocation0]]
  $region30: #{tpu_custom_call.1} parent=0
    _
  %s6 = ssub.s32 1, %s4
  %s7 = scalar_select 0, %s6, %s4
  $region1: #{tpu_custom_call.1} parent=0
    #allocation2 [shape = 'u8[16384]{0}', space=vmem, size = 0x4000, scoped, tag = 'input window, operand 0, single buffered']
    #allocation3 [shape = 's32[1]{0}', space=sflag, size = 0x4, scoped, tag = 'scoped memory for tpu_custom_call.1']
    #allocation4 [shape = 's32[1]{0}', space=sflag, size = 0x4, scoped, tag = 'scoped memory for tpu_custom_call.1']
    #allocation5 [shape = 'u8[12288]{0}', space=vmem, size = 0x3000, scoped, tag = 'input window, operand 1, single buffered']
    #allocation6 [shape = 's32[1]{0}', space=sflag, size = 0x4, scoped, tag = 'scoped memory for tpu_custom_call.1']
    #allocation7 [shape = 'u8[16384]{0}', space=vmem, size = 0x4000, scoped, tag = 'output window, operand 0, single buffered']
    %8 = vsyncpa [#allocation3], 0
    %9 = vsyncpa [#allocation6], 0
    %10 = vsyncpa [#allocation4], 0
    // Predicated region
    $region2: #{tpu_custom_call.1} parent=1 // pred_check
      _
    $region3: #{tpu_custom_call.1} parent=1 // pred_check_branch
      %12 = sbr.rel (0) target = $region5
    $region4: #{tpu_custom_call.1} parent=1 // pred_region
      %14 = vsyncadd [#allocation3], 0
      %s15 = sshll.u32 %s0, 4
      %s16 = int_to_ptr.hbm [resolvable:$true] %s15
      %s17 = sshll.u32 [#allocation2], 4
      %s18 = int_to_ptr.vmem [resolvable:$true] %s17
      %23 = dma.hbm_to_vmem [thread:$0]  %s16, 512, %s18, [#allocation3], 128, 128, 8
    $region5: #{tpu_custom_call.1} parent=1 // pred_fallthru
      _
    // Predicated region
    $region6: #{tpu_custom_call.1} parent=1 // pred_check
      _
    $region7: #{tpu_custom_call.1} parent=1 // pred_check_branch
      %25 = sbr.rel (0) target = $region9
    $region8: #{tpu_custom_call.1} parent=1 // pred_region
      %27 = vsyncadd [#allocation6], 0
      %s28 = sshll.u32 %s1, 4
      %s29 = int_to_ptr.hbm [resolvable:$true] %s28
      %s30 = sshll.u32 [#allocation5], 4
      %s31 = int_to_ptr.vmem [resolvable:$true] %s30
      %36 = dma.hbm_to_vmem [thread:$0]  %s29, 384, %s31, [#allocation6], 64, 64, 4
    $region9: #{tpu_custom_call.1} parent=1 // pred_fallthru
      _
    // Predicated region
    $region10: #{tpu_custom_call.1} parent=1 // pred_check
      _
    $region11: #{tpu_custom_call.1} parent=1 // pred_check_branch
      %38 = sbr.rel (0) target = $region13
    $region12: #{tpu_custom_call.1} parent=1 // pred_region
      _
    $region13: #{tpu_custom_call.1} parent=1 // pred_fallthru
      _
    // Predicated region
    $region14: #{tpu_custom_call.1} parent=1 // pred_check
      _
    $region15: #{tpu_custom_call.1} parent=1 // pred_check_branch
      %40 = sbr.rel (0) target = $region17
    $region16: #{tpu_custom_call.1} parent=1 // pred_region
      %42 = dma.done [#allocation3], 512
    $region17: #{tpu_custom_call.1} parent=1 // pred_fallthru
      _
    // Predicated region
    $region18: #{tpu_custom_call.1} parent=1 // pred_check
      _
    $region19: #{tpu_custom_call.1} parent=1 // pred_check_branch
      %44 = sbr.rel (0) target = $region21
    $region20: #{tpu_custom_call.1} parent=1 // pred_region
      %46 = dma.done [#allocation6], 384
    $region21: #{tpu_custom_call.1} parent=1 // pred_fallthru
      _
    %v48 = vld [vmem:[#allocation2] sm:$0xff]
    %v49 = vld [vmem:[#allocation2 + $0x8] sm:$0xff]
    %v50 = vld [vmem:[#allocation2 + $0x10] sm:$0xff]
    %v51 = vld [vmem:[#allocation2 + $0x18] sm:$0xff]
    %v52 = vpack.c.bf16 %v49, %v48
    %v53 = vpack.c.bf16 %v51, %v50
    %v54 = vld [vmem:[#allocation5] sm:$0xf]
    %v55 = vld [vmem:[#allocation5 + $0x4] sm:$0xf]
    %v56 = vld [vmem:[#allocation5 + $0x8] sm:$0xf]
    %v57 = vld [vmem:[#allocation5 + $0xc] sm:$0xf]
    %v58 = vld [vmem:[#allocation5 + $0x10] sm:$0xf]
    %v59 = vld [vmem:[#allocation5 + $0x14] sm:$0xf]
    %v60 = vld [vmem:[%s2] sm:$0x1]
    %v62 = vperm.slane %v60, 0
    %v70 = vunpack.c.l.b16 %v54
    %v71 = vunpack.c.l.b16 %v55
    %v72 = vunpack.c.l.b16 %v56
    %v73 = vunpack.c.l.b16 %v57
    %v74 = vunpack.c.l.b16 %v58
    %v75 = vunpack.c.l.b16 %v59
    %v76 = vpack.c.b16 %v71, %v70
    %v77 = vpack.c.b16 %v73, %v72
    %v78 = vpack.c.b16 %v75, %v74
    %vm82 = vcmask 392192
    %v84 = vsel %vm82, %v52, 0
    %v87 = vsel %vm82, %v53, 0
    %89 = vmatpush.bf16.msra.mxu0 0
    %90 = vmatpush.bf16.msra.mxu0 0
    %91 = vmatpush.bf16.msra.mxu0 0
    %92 = vmatpush.bf16.msra.mxu0 0
    %93 = vmatpush.bf16.msra.mxu0 0
    %94 = vmatpush.bf16.msra.mxu0 %v78
    %95 = vmatpush.bf16.msra.mxu0 %v77
    %96 = vmatpush.bf16.msra.mxu0 %v76
    %97 = vmatmul.bf16.gmra.mxu0 %v84
    %v98 = vpop.f32.mrf.mxu0
    %v99 = vadd.f32 %v62, %v98
    %v100 = vpop.f32.mrf.mxu0
    %v101 = vadd.f32 %v62, %v100
    %102 = vmatmul.bf16.gmra.mxu0 %v87
    %v103 = vpop.f32.mrf.mxu0
    %v104 = vadd.f32 %v62, %v103
    %v105 = vpop.f32.mrf.mxu0
    %v106 = vadd.f32 %v62, %v105
    %107 = vdwg.mxu0
    %v108 = vmax.f32 %v99, 0.0
    %v109 = vmax.f32 %v101, 0.0
    %v110 = vmax.f32 %v104, 0.0
    %v111 = vmax.f32 %v106, 0.0
    %112 = vst [vmem:[#allocation7] sm:$0xff] %v108
    %113 = vst [vmem:[#allocation7 + $0x8] sm:$0xff] %v109
    %114 = vst [vmem:[#allocation7 + $0x10] sm:$0xff] %v110
    %115 = vst [vmem:[#allocation7 + $0x18] sm:$0xff] %v111
    // Predicated region
    $region22: #{tpu_custom_call.1} parent=1 // pred_check
      _
    $region23: #{tpu_custom_call.1} parent=1 // pred_check_branch
      %117 = sbr.rel (0) target = $region25
    $region24: #{tpu_custom_call.1} parent=1 // pred_region
      %119 = vsyncadd [#allocation4], 0
      %s120 = sshll.u32 [#allocation7], 4
      %s121 = int_to_ptr.vmem [resolvable:$true] %s120
      %s122 = sshll.u32 %s3, 4
      %s123 = int_to_ptr.hbm [resolvable:$true] %s122
      %128 = dma.vmem_to_hbm [thread:$0]  %s121, 512, %s123, [#allocation4], 128, 128, 8
    $region25: #{tpu_custom_call.1} parent=1 // pred_fallthru
      _
    // Predicated region
    $region26: #{tpu_custom_call.1} parent=1 // pred_check
      _
    $region27: #{tpu_custom_call.1} parent=1 // pred_check_branch
      %130 = sbr.rel (0) target = $region29
    $region28: #{tpu_custom_call.1} parent=1 // pred_region
      %132 = dma.done [#allocation4], 512
    $region29: #{tpu_custom_call.1} parent=1 // pred_fallthru
      _
    %133 = vsyncpa [#allocation3], 1
    %134 = vsyncpa [#allocation6], 1
    %135 = vsyncpa [#allocation4], 1

</llo_original>
